<compile_context>
chip_gen: v5e
topology: v5e:2x2
jax: 0.10.0
libtpu: 0.0.40
codegen_flags: <defaults>
</compile_context>

<pallas_src>
import jax
import jax.numpy as jnp
import numpy as np
from jax.experimental import pallas as pl
from jax.experimental.pallas import tpu as pltpu


_MAX_BLOCK_BATCH = 512     # cap per-step batch (compile time / vreg pressure)
_MIN_GRID_STEPS = 4        # >= 2 pipelined steps per TensorCore on dual-TC parts
_LANE = 128


def _round_up(x, m):
    return ((x + m - 1) // m) * m


def _sublanes(dtype):
    return {4: 8, 2: 16, 1: 32}.get(np.dtype(dtype).itemsize, 8)


def _padded_bytes(shape, dtype):
    """Physical VMEM bytes of a block: last dim rounds up to 128 lanes, second
    to last to the dtype's sublane count; leading dims multiply."""
    itemsize = np.dtype(dtype).itemsize
    shape = tuple(int(s) for s in shape)
    if len(shape) == 1:
        shape = (1,) + shape
    lead = 1
    for s in shape[:-2]:
        lead *= s
    return (lead * _round_up(shape[-2], _sublanes(dtype))
            * _round_up(shape[-1], _LANE) * itemsize)


def _vmem_budgets():
    """Generation-aware scoped-VMEM limit + budget for blocks/intermediates."""
    try:
        cap = int(pltpu.get_tpu_info().vmem_capacity_bytes)
    except Exception:
        cap = 64 * 1024 * 1024                     # most conservative (v7x per-TC)
    vmem_limit = min(cap * 3 // 4, 100 * 1024 * 1024)   # 48 MiB v7x / 96 MiB v5e,v6e
    budget = min(max(vmem_limit - 12 * 1024 * 1024, 4 * 1024 * 1024),
                 64 * 1024 * 1024)
    return vmem_limit, budget


def _step_vmem_bytes(bb, N, R, L, O, dtypes):
    """Conservative per-grid-step footprint: double-buffered input/output blocks
    (padded bytes) plus the f32 in-kernel intermediates."""
    a_dt, x0_dt, x1_dt = dtypes
    f32 = jnp.float32
    blocks = 2 * (_padded_bytes((bb, N, N), a_dt)
                  + _padded_bytes((bb, R, N), x0_dt)
                  + _padded_bytes((bb, N, L), x1_dt)
                  + _padded_bytes((1, L), f32) + _padded_bytes((1, 1), f32)
                  + _padded_bytes((R, O), f32) + _padded_bytes((1, O), f32)
                  + _padded_bytes((1, bb, O), f32))
    interm = (2 * _padded_bytes((bb, N, N), f32)      # A upcast + A*t product
              + _padded_bytes((bb, N, L), f32)        # x1 upcast
              + 2 * _padded_bytes((bb, R, N), f32)    # x0^T upcast + x0^T*w2 product
              + _padded_bytes((bb, N, 1), f32)        # t
              + 2 * _padded_bytes((bb, 1, N), f32)    # v, w2
              + _padded_bytes((bb, R), f32)
              + _padded_bytes((bb, O), f32))
    return blocks + interm


def _pick_block_batch(B, N, R, L, O, dtypes, budget_bytes):
    """Largest per-step batch that fits the physical-VMEM budget while keeping
    at least _MIN_GRID_STEPS pipelined grid steps when B allows."""
    min_steps = min(B, _MIN_GRID_STEPS)
    cap = max(1, min(B, _MAX_BLOCK_BATCH, max(1, B // min_steps)))
    for cand in range(cap, 0, -1):
        if _step_vmem_bytes(cand, N, R, L, O, dtypes) <= budget_bytes:
            return cand
    return 1


def _qgcn_last_layer_kernel(a_ref, x0t_ref, x1_ref,
                            wl_ref, bl_ref, wr_ref, br_ref,
                            out_ref):
    # a_ref  : (bb, N, N) transfer dtype
    # x0t_ref: (bb, R, N) transfer dtype  (x0 transposed in the wrapper)
    # x1_ref : (bb, N, L) transfer dtype
    # wl_ref : (1, L) f32   left_linear.weight (row layout, VPU broadcast)
    # bl_ref : (1, 1) f32   left_linear.bias
    # wr_ref : (R, O) f32   right_linear.weight^T
    # br_ref : (1, O) f32   right_linear.bias
    # out_ref: (1, bb, O) f32
    f32 = jnp.float32
    wl = wl_ref[...]                                     # (1, L)
    bl = bl_ref[...]                                     # (1, 1)
    wr = wr_ref[...]                                     # (R, O)
    br = br_ref[...]                                     # (1, O)

    # t[b,n] = <x1[b,n,:], w_left>  -- lane reduce, sublane-oriented result.
    x1 = x1_ref[...].astype(f32)                         # (bb, N, L)
    t = jnp.sum(x1 * wl, axis=-1, keepdims=True)         # (bb, N, 1)

    # v[b,m] = sum_n t[b,n] * A[b,n,m]  -- sublane reduce, lane-oriented result.
    a = a_ref[...].astype(f32)                           # (bb, N, N)
    v = jnp.sum(a * t, axis=1, keepdims=True)            # (bb, 1, N)
    w2 = v + bl                                          # left bias folded in

    # u[b,r] = sum_m w2[b,m] * x0[b,m,r]  -- lane reduce against x0^T.
    x0t = x0t_ref[...].astype(f32)                       # (bb, R, N)
    u = jnp.sum(x0t * w2, axis=-1)                       # (bb, R)

    # out = u @ w_right^T + b_right  -- one small MXU matmul per grid step.
    out = jnp.dot(u, wr, preferred_element_type=f32) + br   # (bb, O)
    out_ref[0] = out.astype(out_ref.dtype)


def qgcn_last_layer(A, x0, x1, w_left, b_left, w_right, b_right,
                    *, transfer_dtype=None):
    """
    A        : (B, N, N)
    x0       : (B, N, R)
    x1       : (B, N, L)
    w_left   : (1, L)   left_linear.weight  (PyTorch layout)
    b_left   : (1,)     left_linear.bias
    w_right  : (O, R)   right_linear.weight (PyTorch layout)
    b_right  : (O,)     right_linear.bias
    transfer_dtype : dtype of the HBM->VMEM stream of A/x0/x1.  None (default)
                     keeps the inputs as-is (no extra wrapper cast pass).
                     jnp.bfloat16 halves the bandwidth-bound A stream; ideally
                     feed bf16 inputs so the cast is not an extra HBM pass.
    returns  : (B, O) float32
    """
    B, N, _ = A.shape
    R = x0.shape[-1]
    L = x1.shape[-1]
    O = w_right.shape[0]

    if transfer_dtype is not None:
        # TODO(synk): verify the convert fuses into the producer (or use
        # CompilerParams(allow_input_fusion)); a standalone cast is an extra
        # HBM pass on a bandwidth-bound kernel.
        A = A.astype(transfer_dtype)
        x0 = x0.astype(transfer_dtype)
        x1 = x1.astype(transfer_dtype)

    # x0 (the small array) is transposed once so every in-kernel contraction is
    # a native lane/sublane reduce -- no in-kernel transpose/relayout needed.
    x0_t = jnp.swapaxes(x0, 1, 2)                        # (B, R, N)

    # Tiny weights stay f32; layouts chosen for the kernel's access pattern.
    wl = jnp.asarray(w_left, jnp.float32).reshape(1, L)
    bl = jnp.asarray(b_left, jnp.float32).reshape(1, 1)
    wr = jnp.asarray(w_right, jnp.float32).T             # (R, O)
    br = jnp.asarray(b_right, jnp.float32).reshape(1, O)

    vmem_limit, vmem_budget = _vmem_budgets()
    dtypes = (A.dtype, x0_t.dtype, x1.dtype)
    bb = _pick_block_batch(B, N, R, L, O, dtypes, vmem_budget)
    G = -(-B // bb)
    B_pad = G * bb
    if B_pad != B:
        pad = B_pad - B
        A = jnp.pad(A, ((0, pad), (0, 0), (0, 0)))
        x0_t = jnp.pad(x0_t, ((0, pad), (0, 0), (0, 0)))
        x1 = jnp.pad(x1, ((0, pad), (0, 0), (0, 0)))

    # TODO(synk): for N large enough that a single (1,N,N) block exceeds the
    # budget (v7x hits this at ~half the N of v5e/v6e), add a trailing
    # "arbitrary" grid axis column-tiling A with a VMEM accumulator for v/u.
    # TODO(synk): for small trailing dims, feed A/x0/x1 as lane-dense (B, N*X)
    # 2-D slabs (and pack the output as (G, bb*O)) once Mosaic reshape of those
    # slabs is verified; current 3-D blocks pay (8,128) tile padding in VMEM.

    bytes_accessed = (B_pad * (N * N * np.dtype(A.dtype).itemsize
                               + R * N * np.dtype(x0_t.dtype).itemsize
                               + N * L * np.dtype(x1.dtype).itemsize)
                      + (L + 1 + R * O + O) * 4
                      + B_pad * O * 4)
    flops = 2 * B_pad * (N * L + N * N + N * R + R * O)
    cost = pl.CostEstimate(flops=flops, transcendentals=0,
                           bytes_accessed=bytes_accessed)

    out3 = pl.pallas_call(
        _qgcn_last_layer_kernel,
        out_shape=jax.ShapeDtypeStruct((G, bb, O), jnp.float32),
        grid_spec=pltpu.PrefetchScalarGridSpec(
            num_scalar_prefetch=0,
            grid=(G,),
            in_specs=[
                pl.BlockSpec((bb, N, N), lambda g: (g, 0, 0)),   # A
                pl.BlockSpec((bb, R, N), lambda g: (g, 0, 0)),   # x0^T
                pl.BlockSpec((bb, N, L), lambda g: (g, 0, 0)),   # x1
                pl.BlockSpec((1, L),     lambda g: (0, 0)),      # w_left (row)
                pl.BlockSpec((1, 1),     lambda g: (0, 0)),      # b_left
                pl.BlockSpec((R, O),     lambda g: (0, 0)),      # w_right^T
                pl.BlockSpec((1, O),     lambda g: (0, 0)),      # b_right
            ],
            out_specs=pl.BlockSpec((1, bb, O), lambda g: (g, 0, 0)),
        ),
        compiler_params=pltpu.CompilerParams(
            dimension_semantics=("parallel",),
            vmem_limit_bytes=vmem_limit),
        cost_estimate=cost,
    )(A, x0_t, x1, wl, bl, wr, br)

    return out3.reshape(B_pad, O)[:B]


def _reference(A, x0, x1, w_left, b_left, w_right, b_right):
    # Pure-JAX reference mirroring the PyTorch forward exactly (HIGHEST precision).
    hp = jax.lax.Precision.HIGHEST
    x1_A = jnp.einsum('bnl,bnm->blm', x1, A, precision=hp)                    # (B,L,N)
    x1_A_T = jnp.transpose(x1_A, (0, 2, 1))                                   # (B,N,L)
    W2 = jnp.einsum('bnl,ol->bno', x1_A_T, w_left, precision=hp) + b_left     # (B,N,1)
    W2_T = jnp.transpose(W2, (0, 2, 1))                                       # (B,1,N)
    W2_x0 = jnp.einsum('bon,bnr->bor', W2_T, x0, precision=hp)                # (B,1,R)
    out = jnp.einsum('bor,dr->bod', W2_x0, w_right, precision=hp) + b_right   # (B,1,O)
    return out[:, 0, :]


if __name__ == "__main__":
    B, N = 8, 16
    left_in_dim, right_in_dim, out_dim = 8, 8, 4

    key = jax.random.PRNGKey(0)
    kA, kx0, kx1, kwl, kbl, kwr, kbr = jax.random.split(key, 7)

    A = jax.random.normal(kA, (B, N, N), jnp.float32)
    x0 = jax.random.normal(kx0, (B, N, right_in_dim), jnp.float32)
    x1 = jax.random.normal(kx1, (B, N, left_in_dim), jnp.float32)

    # PyTorch-Linear-style uniform init bounds, deterministic.
    lim_l = 1.0 / np.sqrt(left_in_dim)
    lim_r = 1.0 / np.sqrt(right_in_dim)
    w_left = jax.random.uniform(kwl, (1, left_in_dim), jnp.float32, -lim_l, lim_l)
    b_left = jax.random.uniform(kbl, (1,), jnp.float32, -lim_l, lim_l)
    w_right = jax.random.uniform(kwr, (out_dim, right_in_dim), jnp.float32, -lim_r, lim_r)
    b_right = jax.random.uniform(kbr, (out_dim,), jnp.float32, -lim_r, lim_r)

    # Full-precision path: exact PyTorch-equivalent semantics.
    out_f32 = qgcn_last_layer(A, x0, x1, w_left, b_left, w_right, b_right)
    jax.block_until_ready(out_f32)
    ref_f32 = _reference(A, x0, x1, w_left, b_left, w_right, b_right)
    np.testing.assert_allclose(np.asarray(out_f32), np.asarray(ref_f32),
                               rtol=1e-4, atol=1e-4)
    assert out_f32.shape == (B, out_dim)

    # Awkward batch size (exercises the pad-to-multiple-of-bb path).
    B2 = 11
    kA2, kx02, kx12 = jax.random.split(jax.random.PRNGKey(1), 3)
    A2 = jax.random.normal(kA2, (B2, N, N), jnp.float32)
    x02 = jax.random.normal(kx02, (B2, N, right_in_dim), jnp.float32)
    x12 = jax.random.normal(kx12, (B2, N, left_in_dim), jnp.float32)
    out_pad = qgcn_last_layer(A2, x02, x12, w_left, b_left, w_right, b_right)
    jax.block_until_ready(out_pad)
    ref_pad = _reference(A2, x02, x12, w_left, b_left, w_right, b_right)
    np.testing.assert_allclose(np.asarray(out_pad), np.asarray(ref_pad),
                               rtol=1e-4, atol=1e-4)

    # Bandwidth-optimized opt-in path: bf16 HBM->VMEM stream, f32 math in-kernel.
    out_bf16 = qgcn_last_layer(A, x0, x1, w_left, b_left, w_right, b_right,
                               transfer_dtype=jnp.bfloat16)
    jax.block_until_ready(out_bf16)
    rnd = lambda t: t.astype(jnp.bfloat16).astype(jnp.float32)
    ref_bf16 = _reference(rnd(A), rnd(x0), rnd(x1), w_left, b_left, w_right, b_right)
    np.testing.assert_allclose(np.asarray(out_bf16), np.asarray(ref_bf16),
                               rtol=5e-3, atol=5e-3)

    print("KERNEL_OK")
</pallas_src>

<mosaic_0001>
module attributes {stable_mosaic.version = 11 : i64} {
  func.func @_qgcn_last_layer_kernel(%arg0: i32, %arg1: memref<2x16x16xf32, #tpu.memory_space<vmem>>, %arg2: memref<2x8x16xf32, #tpu.memory_space<vmem>>, %arg3: memref<2x16x8xf32, #tpu.memory_space<vmem>>, %arg4: memref<1x8xf32, #tpu.memory_space<vmem>>, %arg5: memref<1x1xf32, #tpu.memory_space<vmem>>, %arg6: memref<8x4xf32, #tpu.memory_space<vmem>>, %arg7: memref<1x4xf32, #tpu.memory_space<vmem>>, %arg8: memref<1x2x4xf32, #tpu.memory_space<vmem>>) attributes {dimension_semantics = [#tpu.dimension_semantics<parallel>], iteration_bounds = array<i64: 4>, scalar_prefetch = 0 : i64, scratch_operands = 0 : i64, tpu.core_type = #tpu.core_type<tc>, window_params = [{transform_indices = @transform_0, window_bounds = array<i64: 2, 16, 16>}, {transform_indices = @transform_1, window_bounds = array<i64: 2, 8, 16>}, {transform_indices = @transform_2, window_bounds = array<i64: 2, 16, 8>}, {pipeline_mode = #tpu.pipeline_mode<synchronous>, transform_indices = @transform_3, window_bounds = array<i64: 1, 8>}, {pipeline_mode = #tpu.pipeline_mode<synchronous>, transform_indices = @transform_4, window_bounds = array<i64: 1, 1>}, {pipeline_mode = #tpu.pipeline_mode<synchronous>, transform_indices = @transform_5, window_bounds = array<i64: 8, 4>}, {pipeline_mode = #tpu.pipeline_mode<synchronous>, transform_indices = @transform_6, window_bounds = array<i64: 1, 4>}, {transform_indices = @transform_7, window_bounds = array<i64: 1, 2, 4>}]} {
    %c0 = arith.constant 0 : index
    %c0_0 = arith.constant 0 : index
    %0 = vector.load %arg4[%c0, %c0_0] : memref<1x8xf32, #tpu.memory_space<vmem>>, vector<1x8xf32>
    %c0_1 = arith.constant 0 : index
    %c0_2 = arith.constant 0 : index
    %1 = vector.load %arg5[%c0_1, %c0_2] : memref<1x1xf32, #tpu.memory_space<vmem>>, vector<1x1xf32>
    %c0_3 = arith.constant 0 : index
    %c0_4 = arith.constant 0 : index
    %2 = vector.load %arg6[%c0_3, %c0_4] : memref<8x4xf32, #tpu.memory_space<vmem>>, vector<8x4xf32>
    %c0_5 = arith.constant 0 : index
    %c0_6 = arith.constant 0 : index
    %3 = vector.load %arg7[%c0_5, %c0_6] : memref<1x4xf32, #tpu.memory_space<vmem>>, vector<1x4xf32>
    %c0_7 = arith.constant 0 : index
    %c0_8 = arith.constant 0 : index
    %c0_9 = arith.constant 0 : index
    %4 = vector.load %arg3[%c0_7, %c0_8, %c0_9] : memref<2x16x8xf32, #tpu.memory_space<vmem>>, vector<2x16x8xf32>
    %5 = vector.shape_cast %0 : vector<1x8xf32> to vector<1x1x8xf32>
    %6 = vector.broadcast %5 : vector<1x1x8xf32> to vector<2x16x8xf32>
    %7 = arith.mulf %4, %6 : vector<2x16x8xf32>
    %cst = arith.constant dense<0.000000e+00> : vector<2x16xf32>
    %8 = vector.multi_reduction <add>, %7, %cst [2] : vector<2x16x8xf32> to vector<2x16xf32>
    %9 = vector.shape_cast %8 : vector<2x16xf32> to vector<2x16x1xf32>
    %c0_10 = arith.constant 0 : index
    %c0_11 = arith.constant 0 : index
    %c0_12 = arith.constant 0 : index
    %10 = vector.load %arg1[%c0_10, %c0_11, %c0_12] : memref<2x16x16xf32, #tpu.memory_space<vmem>>, vector<2x16x16xf32>
    %11 = vector.broadcast %9 : vector<2x16x1xf32> to vector<2x16x16xf32>
    %12 = arith.mulf %10, %11 : vector<2x16x16xf32>
    %cst_13 = arith.constant dense<0.000000e+00> : vector<2x16xf32>
    %13 = vector.multi_reduction <add>, %12, %cst_13 [1] : vector<2x16x16xf32> to vector<2x16xf32>
    %14 = vector.shape_cast %13 : vector<2x16xf32> to vector<2x1x16xf32>
    %15 = vector.shape_cast %1 : vector<1x1xf32> to vector<1x1x1xf32>
    %16 = vector.broadcast %15 : vector<1x1x1xf32> to vector<2x1x16xf32>
    %17 = arith.addf %14, %16 : vector<2x1x16xf32>
    %c0_14 = arith.constant 0 : index
    %c0_15 = arith.constant 0 : index
    %c0_16 = arith.constant 0 : index
    %18 = vector.load %arg2[%c0_14, %c0_15, %c0_16] : memref<2x8x16xf32, #tpu.memory_space<vmem>>, vector<2x8x16xf32>
    %19 = vector.broadcast %17 : vector<2x1x16xf32> to vector<2x8x16xf32>
    %20 = arith.mulf %18, %19 : vector<2x8x16xf32>
    %cst_17 = arith.constant dense<0.000000e+00> : vector<2x8xf32>
    %21 = vector.multi_reduction <add>, %20, %cst_17 [2] : vector<2x8x16xf32> to vector<2x8xf32>
    %cst_18 = arith.constant dense<0.000000e+00> : vector<2x4xf32>
    %22 = tpu.matmul %21, %2, %cst_18 {dimension_numbers = #tpu.dot_dimension_numbers<[1], [0], [0], [1], [0, 0, 1, 1], [], []>} : vector<2x8xf32>, vector<8x4xf32>, vector<2x4xf32> -> vector<2x4xf32>
    %23 = vector.broadcast %3 : vector<1x4xf32> to vector<2x4xf32>
    %24 = arith.addf %22, %23 : vector<2x4xf32>
    %c0_19 = arith.constant 0 : index
    %c0_20 = arith.constant 0 : index
    %c0_21 = arith.constant 0 : index
    %25 = vector.load %arg8[%c0_19, %c0_20, %c0_21] : memref<1x2x4xf32, #tpu.memory_space<vmem>>, vector<1x2x4xf32>
    %26 = vector.shape_cast %25 : vector<1x2x4xf32> to vector<2x4xf32>
    %27 = vector.shape_cast %24 : vector<2x4xf32> to vector<1x2x4xf32>
    tpu.vector_store %arg8[%c0_19, %c0_20, %c0_21], %27 {strides = array<i32>} : memref<1x2x4xf32, #tpu.memory_space<vmem>>, vector<1x2x4xf32>,
    return
  }
  func.func @transform_0(%arg0: i32) -> (i32, i32, i32) {
    %c0_i32 = arith.constant 0 : i32
    %c0_i32_0 = arith.constant 0 : i32
    %c0_i32_1 = arith.constant 0 : i32
    return %arg0, %c0_i32, %c0_i32_0 : i32, i32, i32
  }
  func.func @transform_1(%arg0: i32) -> (i32, i32, i32) {
    %c0_i32 = arith.constant 0 : i32
    %c0_i32_0 = arith.constant 0 : i32
    %c0_i32_1 = arith.constant 0 : i32
    return %arg0, %c0_i32, %c0_i32_0 : i32, i32, i32
  }
  func.func @transform_2(%arg0: i32) -> (i32, i32, i32) {
    %c0_i32 = arith.constant 0 : i32
    %c0_i32_0 = arith.constant 0 : i32
    %c0_i32_1 = arith.constant 0 : i32
    return %arg0, %c0_i32, %c0_i32_0 : i32, i32, i32
  }
  func.func @transform_3(%arg0: i32) -> (i32, i32) {
    %c0_i32 = arith.constant 0 : i32
    %c0_i32_0 = arith.constant 0 : i32
    %c0_i32_1 = arith.constant 0 : i32
    return %c0_i32, %c0_i32_0 : i32, i32
  }
  func.func @transform_4(%arg0: i32) -> (i32, i32) {
    %c0_i32 = arith.constant 0 : i32
    %c0_i32_0 = arith.constant 0 : i32
    %c0_i32_1 = arith.constant 0 : i32
    return %c0_i32, %c0_i32_0 : i32, i32
  }
  func.func @transform_5(%arg0: i32) -> (i32, i32) {
    %c0_i32 = arith.constant 0 : i32
    %c0_i32_0 = arith.constant 0 : i32
    %c0_i32_1 = arith.constant 0 : i32
    return %c0_i32, %c0_i32_0 : i32, i32
  }
  func.func @transform_6(%arg0: i32) -> (i32, i32) {
    %c0_i32 = arith.constant 0 : i32
    %c0_i32_0 = arith.constant 0 : i32
    %c0_i32_1 = arith.constant 0 : i32
    return %c0_i32, %c0_i32_0 : i32, i32
  }
  func.func @transform_7(%arg0: i32) -> (i32, i32, i32) {
    %c0_i32 = arith.constant 0 : i32
    %c0_i32_0 = arith.constant 0 : i32
    %c0_i32_1 = arith.constant 0 : i32
    return %arg0, %c0_i32, %c0_i32_0 : i32, i32, i32
  }
}

</mosaic_0001>

<llo_original>
// kernel: tpu_custom_call.1
$region0: #{tpu_custom_call.1}
  #allocation0 [shape = 'u32[]', space=smem, size = 0x4, offset = 0x4, fixed_abs, tag = 'smem constant byte address 0x4 - core index']
  #allocation1 [shape = 'u32[72,128]{1,0:T(1,128)}', space=vmem, size = 0x9000, scoped, tag = 'internal scratch']
  #allocation2 [shape = 'f32[1,1]{1,0:T(1,128)S(1)}', space=vmem, size = 0x200, scoped, tag = 'scoped memory for tpu_custom_call.1']
  %s0 = inlined_call_operand.vmem [shape: f32[8,16,16], index: 0, kind: input, shape index: {}]
  %s1 = inlined_call_operand.vmem [shape: f32[8,8,16], index: 1, kind: input, shape index: {}]
  %s2 = inlined_call_operand.vmem [shape: f32[8,16,8], index: 2, kind: input, shape index: {}]
  %s3 = inlined_call_operand.vmem [shape: f32[1,8], index: 3, kind: input, shape index: {}]
  %s4 = inlined_call_operand.<no memory space> [shape: f32[1,1], index: 4, kind: input, shape index: {}]
  %s5 = inlined_call_operand.vmem [shape: f32[8,4], index: 5, kind: input, shape index: {}]
  %s6 = inlined_call_operand.vmem [shape: f32[1,4], index: 6, kind: input, shape index: {}]
  %s7 = inlined_call_operand.hbm [shape: f32[4,2,4], index: 7, kind: output, shape index: {}]
  %s8 = sld [smem:[#allocation0]]
  $region61: #{tpu_custom_call.1} parent=0
    _
  %s10 = ssub.s32 1, %s8
  %s11 = scalar_select 0, %s10, %s8
  %v12 = vstv %s4
  %13 = vst [vmem:[#allocation2] sm:$0x1] %v12
  $region1: #{tpu_custom_call.1} parent=0
    #allocation3 [shape = 'u8[2048]{0}', space=vmem, size = 0x800, scoped, tag = 'output window, operand 0']
    #allocation4 [shape = 's32[2]{0}', space=sflag, size = 0x8, scoped, tag = 'scoped memory for tpu_custom_call.1']
    %14 = vsyncpa [#allocation4], 0
    %s15 = scalar_lea.sflag [#allocation4], 1
    %16 = vsyncpa %s15, 0
    loop: start=0, step=1, limit=6
    $region2: #{tpu_custom_call.1} parent=1 // loop_pre_header
      _
    $region3: #{tpu_custom_call.1} parent=1 // loop_header
      %s18 = sphi 0, %s22
      %p19 = scmp.ge.s32.totalorder %s18, 6
      %s28 = sphi 0, %s30
      %s31 = sphi 0, %s28
      %s32 = sphi 0, %s31
      %s48 = sphi 0, %s32
      %s54 = sphi 0, %s56
      %s57 = sphi 0, %s54
      %s58 = sphi 0, %s57
      %s74 = sphi 0, %s58
      %s80 = sphi 0, %s82
      %s83 = sphi 0, %s80
      %s84 = sphi 0, %s83
      %s100 = sphi 0, %s84
      %s104 = sphi 0, %s104
      %s106 = sphi 0, %s104
      %s107 = sphi 0, %s106
      %s121 = sphi 0, %s107
      %s125 = sphi 0, %s125
      %s127 = sphi 0, %s125
      %s128 = sphi 0, %s127
      %s142 = sphi 0, %s128
      %s146 = sphi 0, %s146
      %s148 = sphi 0, %s146
      %s149 = sphi 0, %s148
      %s163 = sphi 0, %s149
      %s167 = sphi 0, %s167
      %s169 = sphi 0, %s167
      %s170 = sphi 0, %s169
      %s184 = sphi 0, %s170
      %s190 = sphi 0, %s192
      %s193 = sphi 0, %s190
      %s194 = sphi 0, %s193
      %s210 = sphi 0, %s194
    $region4: #{tpu_custom_call.1} parent=1 // loop_header_branch
      %21 = sbr.rel (%p19) target = $region8
    $region5: #{tpu_custom_call.1} parent=1 // loop_body
      %s23 = ssub.s32 %s18, 1
      %s24 = ssub.s32 %s18, 2
      %s25 = sadd.s32 %s18, 1
      %s26 = ssub.s32 %s18, %s25
      %p27 = scmp.eq.s32.totalorder %s26, 0
      %s29 = sadd.s32 %s28, 1
      %s30 = scalar_select %p27, %s28, %s29
      %p33 = pneg %p27
      %p34 = scmp.eq.s32.totalorder %s18, 3
      %p35 = por %p33, %p34
      %p36 = scmp.ne.s32.totalorder %s28, %s31
      %p37 = scmp.eq.s32.totalorder %s18, 0
      %p38 = por %p36, %p37
      %p39 = scmp.ne.s32.totalorder %s28, %s31
      %p40 = scmp.eq.s32.totalorder %s23, 3
      %p41 = por %p39, %p40
      %p42 = scmp.ne.s32.totalorder %s31, %s32
      %p43 = scmp.eq.s32.totalorder %s23, 0
      %p44 = por %p42, %p43
      %p45 = scmp.ne.s32.totalorder %s31, %s32
      %p46 = scmp.eq.s32.totalorder %s24, 3
      %p47 = por %p45, %p46
      %p49 = scmp.ne.s32.totalorder %s32, %s48
      %p50 = scmp.eq.s32.totalorder %s24, 0
      %p51 = por %p49, %p50
      %s52 = ssub.s32 %s18, %s25
      %p53 = scmp.eq.s32.totalorder %s52, 0
      %s55 = sadd.s32 %s54, 1
      %s56 = scalar_select %p53, %s54, %s55
      %p59 = pneg %p53
      %p60 = scmp.eq.s32.totalorder %s18, 3
      %p61 = por %p59, %p60
      %p62 = scmp.ne.s32.totalorder %s54, %s57
      %p63 = scmp.eq.s32.totalorder %s18, 0
      %p64 = por %p62, %p63
      %p65 = scmp.ne.s32.totalorder %s54, %s57
      %p66 = scmp.eq.s32.totalorder %s23, 3
      %p67 = por %p65, %p66
      %p68 = scmp.ne.s32.totalorder %s57, %s58
      %p69 = scmp.eq.s32.totalorder %s23, 0
      %p70 = por %p68, %p69
      %p71 = scmp.ne.s32.totalorder %s57, %s58
      %p72 = scmp.eq.s32.totalorder %s24, 3
      %p73 = por %p71, %p72
      %p75 = scmp.ne.s32.totalorder %s58, %s74
      %p76 = scmp.eq.s32.totalorder %s24, 0
      %p77 = por %p75, %p76
      %s78 = ssub.s32 %s18, %s25
      %p79 = scmp.eq.s32.totalorder %s78, 0
      %s81 = sadd.s32 %s80, 1
      %s82 = scalar_select %p79, %s80, %s81
      %p85 = pneg %p79
      %p86 = scmp.eq.s32.totalorder %s18, 3
      %p87 = por %p85, %p86
      %p88 = scmp.ne.s32.totalorder %s80, %s83
      %p89 = scmp.eq.s32.totalorder %s18, 0
      %p90 = por %p88, %p89
      %p91 = scmp.ne.s32.totalorder %s80, %s83
      %p92 = scmp.eq.s32.totalorder %s23, 3
      %p93 = por %p91, %p92
      %p94 = scmp.ne.s32.totalorder %s83, %s84
      %p95 = scmp.eq.s32.totalorder %s23, 0
      %p96 = por %p94, %p95
      %p97 = scmp.ne.s32.totalorder %s83, %s84
      %p98 = scmp.eq.s32.totalorder %s24, 3
      %p99 = por %p97, %p98
      %p101 = scmp.ne.s32.totalorder %s84, %s100
      %p102 = scmp.eq.s32.totalorder %s24, 0
      %p103 = por %p101, %p102
      %s105 = sadd.s32 %s104, 1
      %p108 = scmp.eq.s32.totalorder %s18, 3
      %p109 = scmp.ne.s32.totalorder %s104, %s106
      %p110 = scmp.eq.s32.totalorder %s18, 0
      %p111 = por %p109, %p110
      %p112 = scmp.ne.s32.totalorder %s104, %s106
      %p113 = scmp.eq.s32.totalorder %s23, 3
      %p114 = por %p112, %p113
      %p115 = scmp.ne.s32.totalorder %s106, %s107
      %p116 = scmp.eq.s32.totalorder %s23, 0
      %p117 = por %p115, %p116
      %p118 = scmp.ne.s32.totalorder %s106, %s107
      %p119 = scmp.eq.s32.totalorder %s24, 3
      %p120 = por %p118, %p119
      %p122 = scmp.ne.s32.totalorder %s107, %s121
      %p123 = scmp.eq.s32.totalorder %s24, 0
      %p124 = por %p122, %p123
      %s126 = sadd.s32 %s125, 1
      %p129 = scmp.eq.s32.totalorder %s18, 3
      %p130 = scmp.ne.s32.totalorder %s125, %s127
      %p131 = scmp.eq.s32.totalorder %s18, 0
      %p132 = por %p130, %p131
      %p133 = scmp.ne.s32.totalorder %s125, %s127
      %p134 = scmp.eq.s32.totalorder %s23, 3
      %p135 = por %p133, %p134
      %p136 = scmp.ne.s32.totalorder %s127, %s128
      %p137 = scmp.eq.s32.totalorder %s23, 0
      %p138 = por %p136, %p137
      %p139 = scmp.ne.s32.totalorder %s127, %s128
      %p140 = scmp.eq.s32.totalorder %s24, 3
      %p141 = por %p139, %p140
      %p143 = scmp.ne.s32.totalorder %s128, %s142
      %p144 = scmp.eq.s32.totalorder %s24, 0
      %p145 = por %p143, %p144
      %s147 = sadd.s32 %s146, 1
      %p150 = scmp.eq.s32.totalorder %s18, 3
      %p151 = scmp.ne.s32.totalorder %s146, %s148
      %p152 = scmp.eq.s32.totalorder %s18, 0
      %p153 = por %p151, %p152
      %p154 = scmp.ne.s32.totalorder %s146, %s148
      %p155 = scmp.eq.s32.totalorder %s23, 3
      %p156 = por %p154, %p155
      %p157 = scmp.ne.s32.totalorder %s148, %s149
      %p158 = scmp.eq.s32.totalorder %s23, 0
      %p159 = por %p157, %p158
      %p160 = scmp.ne.s32.totalorder %s148, %s149
      %p161 = scmp.eq.s32.totalorder %s24, 3
      %p162 = por %p160, %p161
      %p164 = scmp.ne.s32.totalorder %s149, %s163
      %p165 = scmp.eq.s32.totalorder %s24, 0
      %p166 = por %p164, %p165
      %s168 = sadd.s32 %s167, 1
      %p171 = scmp.eq.s32.totalorder %s18, 3
      %p172 = scmp.ne.s32.totalorder %s167, %s169
      %p173 = scmp.eq.s32.totalorder %s18, 0
      %p174 = por %p172, %p173
      %p175 = scmp.ne.s32.totalorder %s167, %s169
      %p176 = scmp.eq.s32.totalorder %s23, 3
      %p177 = por %p175, %p176
      %p178 = scmp.ne.s32.totalorder %s169, %s170
      %p179 = scmp.eq.s32.totalorder %s23, 0
      %p180 = por %p178, %p179
      %p181 = scmp.ne.s32.totalorder %s169, %s170
      %p182 = scmp.eq.s32.totalorder %s24, 3
      %p183 = por %p181, %p182
      %p185 = scmp.ne.s32.totalorder %s170, %s184
      %p186 = scmp.eq.s32.totalorder %s24, 0
      %p187 = por %p185, %p186
      %s188 = ssub.s32 %s18, %s25
      %p189 = scmp.eq.s32.totalorder %s188, 0
      %s191 = sadd.s32 %s190, 1
      %s192 = scalar_select %p189, %s190, %s191
      %p195 = pneg %p189
      %p196 = scmp.eq.s32.totalorder %s18, 3
      %p197 = por %p195, %p196
      %p198 = scmp.ne.s32.totalorder %s190, %s193
      %p199 = scmp.eq.s32.totalorder %s18, 0
      %p200 = por %p198, %p199
      %p201 = scmp.ne.s32.totalorder %s190, %s193
      %p202 = scmp.eq.s32.totalorder %s23, 3
      %p203 = por %p201, %p202
      %p204 = scmp.ne.s32.totalorder %s193, %s194
      %p205 = scmp.eq.s32.totalorder %s23, 0
      %p206 = por %p204, %p205
      %p207 = scmp.ne.s32.totalorder %s193, %s194
      %p208 = scmp.eq.s32.totalorder %s24, 3
      %p209 = por %p207, %p208
      %p211 = scmp.ne.s32.totalorder %s194, %s210
      %p212 = scmp.eq.s32.totalorder %s24, 0
      %p213 = por %p211, %p212
      %p214 = scmp.le.s32.totalorder 1, %s18
      %p215 = scmp.lt.s32.totalorder %s18, 5
      %p216 = pnand %p214, %p215
      %p217 = pneg %p216
      // Predicated region
      $region9: #{tpu_custom_call.1} parent=5 // pred_check
        _
      $region10: #{tpu_custom_call.1} parent=5 // pred_check_branch
        %219 = sbr.rel (%p216) target = $region12
      $region11: #{tpu_custom_call.1} parent=5 // pred_region
        %s220 = ssub.s32 %s18, 1
        // Predicated region
        $region13: #{tpu_custom_call.1} parent=11 // pred_check
          %p221 = pneg %p117
        $region14: #{tpu_custom_call.1} parent=11 // pred_check_branch
          %223 = sbr.rel (%p221) target = $region16
        $region15: #{tpu_custom_call.1} parent=11 // pred_region
          _
        $region16: #{tpu_custom_call.1} parent=11 // pred_fallthru
          _
        // Predicated region
        $region17: #{tpu_custom_call.1} parent=11 // pred_check
          %p224 = pneg %p138
        $region18: #{tpu_custom_call.1} parent=11 // pred_check_branch
          %226 = sbr.rel (%p224) target = $region20
        $region19: #{tpu_custom_call.1} parent=11 // pred_region
          _
        $region20: #{tpu_custom_call.1} parent=11 // pred_fallthru
          _
        // Predicated region
        $region21: #{tpu_custom_call.1} parent=11 // pred_check
          %p227 = pneg %p159
        $region22: #{tpu_custom_call.1} parent=11 // pred_check_branch
          %229 = sbr.rel (%p227) target = $region24
        $region23: #{tpu_custom_call.1} parent=11 // pred_region
          _
        $region24: #{tpu_custom_call.1} parent=11 // pred_fallthru
          _
        // Predicated region
        $region25: #{tpu_custom_call.1} parent=11 // pred_check
          %p230 = pneg %p180
        $region26: #{tpu_custom_call.1} parent=11 // pred_check_branch
          %232 = sbr.rel (%p230) target = $region28
        $region27: #{tpu_custom_call.1} parent=11 // pred_region
          _
        $region28: #{tpu_custom_call.1} parent=11 // pred_fallthru
          _
      $region12: #{tpu_custom_call.1} parent=5 // pred_fallthru
        _
      %p233 = scmp.lt.s32.totalorder %s18, 4
      // Predicated region
      $region29: #{tpu_custom_call.1} parent=5 // pred_check
        %p234 = pneg %p233
      $region30: #{tpu_custom_call.1} parent=5 // pred_check_branch
        %236 = sbr.rel (%p234) target = $region32
      $region31: #{tpu_custom_call.1} parent=5 // pred_region
        // Predicated region
        $region33: #{tpu_custom_call.1} parent=31 // pred_check
          %p237 = pneg %p38
        $region34: #{tpu_custom_call.1} parent=31 // pred_check_branch
          %239 = sbr.rel (%p237) target = $region36
        $region35: #{tpu_custom_call.1} parent=31 // pred_region
          %s240 = smul.u32 2, %s18
          %p241 = scmp.lt.s32.totalorder %s240, 7
          %s242 = scalar_select %p241, %s240, 7
          %s243 = smul.addr %s242, 2
          %s244 = smul.addr %s243, 8
          %s245 = scalar_lea.vmem %s0, %s244
          %s246 = smul.u32 2, %s18
        $region36: #{tpu_custom_call.1} parent=31 // pred_fallthru
          _
        // Predicated region
        $region37: #{tpu_custom_call.1} parent=31 // pred_check
          %p247 = pneg %p64
        $region38: #{tpu_custom_call.1} parent=31 // pred_check_branch
          %249 = sbr.rel (%p247) target = $region40
        $region39: #{tpu_custom_call.1} parent=31 // pred_region
          %s250 = smul.u32 2, %s18
          %p251 = scmp.lt.s32.totalorder %s250, 7
          %s252 = scalar_select %p251, %s250, 7
          %s253 = smul.addr %s252, 8
          %s254 = scalar_lea.vmem %s1, %s253
          %s255 = smul.u32 2, %s18
        $region40: #{tpu_custom_call.1} parent=31 // pred_fallthru
          _
        // Predicated region
        $region41: #{tpu_custom_call.1} parent=31 // pred_check
          %p256 = pneg %p90
        $region42: #{tpu_custom_call.1} parent=31 // pred_check_branch
          %258 = sbr.rel (%p256) target = $region44
        $region43: #{tpu_custom_call.1} parent=31 // pred_region
          %s259 = smul.u32 2, %s18
          %p260 = scmp.lt.s32.totalorder %s259, 7
          %s261 = scalar_select %p260, %s259, 7
          %s262 = smul.addr %s261, 2
          %s263 = smul.addr %s262, 8
          %s264 = scalar_lea.vmem %s2, %s263
          %s265 = smul.u32 2, %s18
        $region44: #{tpu_custom_call.1} parent=31 // pred_fallthru
          _
      $region32: #{tpu_custom_call.1} parent=5 // pred_fallthru
        _
      %p266 = scmp.le.s32.totalorder 1, %s18
      %p267 = scmp.lt.s32.totalorder %s18, 5
      %p268 = pnand %p266, %p267
      %p269 = pneg %p268
      // Predicated region
      $region45: #{tpu_custom_call.1} parent=5 // pred_check
        _
      $region46: #{tpu_custom_call.1} parent=5 // pred_check_branch
        %271 = sbr.rel (%p268) target = $region48
      $region47: #{tpu_custom_call.1} parent=5 // pred_region
        %s272 = ssub.s32 %s18, 1
        %s273 = smul.u32 2, %s23
        %p274 = scmp.lt.s32.totalorder %s273, 7
        %s275 = scalar_select %p274, %s273, 7
        %s276 = smul.addr %s275, 2
        %s277 = smul.addr %s276, 8
        %s278 = scalar_lea.vmem %s0, %s277
        %p279 = pneg %p44
        %p280 = pneg %p41
        %s281 = smul.u32 2, %s23
        %p282 = scmp.lt.s32.totalorder %s281, 7
        %s283 = scalar_select %p282, %s281, 7
        %s284 = smul.addr %s283, 8
        %s285 = scalar_lea.vmem %s1, %s284
        %p286 = pneg %p70
        %p287 = pneg %p67
        %s288 = smul.u32 2, %s23
        %p289 = scmp.lt.s32.totalorder %s288, 7
        %s290 = scalar_select %p289, %s288, 7
        %s291 = smul.addr %s290, 2
        %s292 = smul.addr %s291, 8
        %s293 = scalar_lea.vmem %s2, %s292
        %p294 = pneg %p96
        %p295 = pneg %p93
        %p296 = pneg %p117
        %p297 = pneg %p114
        %p298 = pneg %p138
        %p299 = pneg %p135
        %p300 = pneg %p159
        %p301 = pneg %p156
        %p302 = pneg %p180
        %p303 = pneg %p177
        %p304 = pneg %p206
        %p305 = pneg %p203
        %s306 = sand.u32 %s193, 1
        %s307 = scalar_lea.sflag [#allocation4], %s306
        %s308 = sand.u32 %s193, 1
        %s309 = smul.addr %s308, 2
        %s310 = scalar_lea.vmem [#allocation3], %s309
        %s311 = smul.u32 2, %s23
        %p312 = scmp.lt.s32.totalorder %s311, 7
        %s313 = scalar_select %p312, %s311, 7
        %s314 = smul.addr %s313, 2
        %s315 = smul.addr %s314, 8
        %s316 = scalar_lea.vmem %s0, %s315
        %s317 = smul.u32 2, %s23
        %s318 = smul.u32 2, %s23
        %p319 = scmp.lt.s32.totalorder %s318, 7
        %s320 = scalar_select %p319, %s318, 7
        %s321 = smul.addr %s320, 8
        %s322 = scalar_lea.vmem %s1, %s321
        %s323 = smul.u32 2, %s23
        %s324 = smul.u32 2, %s23
        %p325 = scmp.lt.s32.totalorder %s324, 7
        %s326 = scalar_select %p325, %s324, 7
        %s327 = smul.addr %s326, 2
        %s328 = smul.addr %s327, 8
        %s329 = scalar_lea.vmem %s2, %s328
        %s330 = smul.u32 2, %s23
        %v331 = vld [vmem:[%s3] sm:$0x1]
        %v332 = vld [vmem:[#allocation2] sm:$0x1]
        %v333 = vld [vmem:[%s5] sm:$0xff]
        %v334 = vld [vmem:[%s6] sm:$0x1]
        %v335 = vld [vmem:[%s329] sm:$0xff]
        %v336 = vld [vmem:[%s329 + $0x8] sm:$0xff]
        %v337 = vld [vmem:[%s329 + $0x10] sm:$0xff]
        %v338 = vld [vmem:[%s329 + $0x18] sm:$0xff]
        %v340 = vperm.slane %v331, 0
        %v342 = vmul.f32 %v335, %v340
        %v343 = vmul.f32 %v336, %v340
        %v344 = vmul.f32 %v337, %v340
        %v345 = vmul.f32 %v338, %v340
        %vm346 = vcmask 64512
        %v347 = vsel %vm346, %v342, 0.0
        %348 = vadd.xlane.f32.xlu0 %v347
        %v349 = vpop.xlane.xlu0 %348
        %v350 = vsel %vm346, %v343, 0.0
        %351 = vadd.xlane.f32.xlu0 %v350
        %v352 = vpop.xlane.xlu0 %351
        %v353 = vsel %vm346, %v344, 0.0
        %354 = vadd.xlane.f32.xlu0 %v353
        %v355 = vpop.xlane.xlu0 %354
        %v356 = vsel %vm346, %v345, 0.0
        %357 = vadd.xlane.f32.xlu0 %v356
        %v358 = vpop.xlane.xlu0 %357
        %v359 = vld [vmem:[%s316] sm:$0xff]
        %v360 = vld [vmem:[%s316 + $0x8] sm:$0xff]
        %v361 = vld [vmem:[%s316 + $0x10] sm:$0xff]
        %v362 = vld [vmem:[%s316 + $0x18] sm:$0xff]
        %v363 = vmul.f32 %v359, %v349
        %v364 = vmul.f32 %v360, %v352
        %v365 = vmul.f32 %v361, %v355
        %v366 = vmul.f32 %v362, %v358
        %vm367 = vcmask 130048
        %v368 = vsel %vm367, %v363, 0.0
        %v369 = vsel %vm367, %v364, 0.0
        %v370 = vadd.f32 %v368, %v369
        %v371 = vrot.slane %v370, 4
        %v372 = vadd.f32 %v370, %v371
        %v373 = vrot.slane %v372, 2
        %v374 = vadd.f32 %v372, %v373
        %v375 = vrot.slane %v374, 1
        %v376 = vadd.f32 %v374, %v375
        %v377 = vsel %vm367, %v365, 0.0
        %v378 = vsel %vm367, %v366, 0.0
        %v379 = vadd.f32 %v377, %v378
        %v380 = vrot.slane %v379, 4
        %v381 = vadd.f32 %v379, %v380
        %v382 = vrot.slane %v381, 2
        %v383 = vadd.f32 %v381, %v382
        %v384 = vrot.slane %v383, 1
        %v385 = vadd.f32 %v383, %v384
        %387 = vset.pattern.permute.xlu0 0
        %388 = vperm.xlu0 %387, %v332
        %v389 = vpop.permute.xlu0 %388
        %v391 = vperm.slane %v389, 0
        %v392 = vadd.f32 %v376, %v391
        %v393 = vadd.f32 %v385, %v391
        %v394 = vld [vmem:[%s322] sm:$0xff]
        %v395 = vld [vmem:[%s322 + $0x8] sm:$0xff]
        %v396 = vmul.f32 %v394, %v392
        %v397 = vmul.f32 %v395, %v393
        %v398 = vsel %vm367, %v396, 0.0
        %399 = vadd.xlane.f32.xlu0 %v398
        %v400 = vpop.xlane.xlu0 %399
        %v401 = vsel %vm367, %v397, 0.0
        %402 = vadd.xlane.f32.xlu0 %v401
        %v403 = vpop.xlane.xlu0 %402
        %v405 = vperm.slane %v334, 0
        %v409 = vlaneseq
        %v410 = vand.u32 %v409, 127
        %v411 = vperm.slane %v400, %v410
        %v412 = vperm.slane %v403, %v410
        %vm413 = vcmask 1041409
        %v414 = vsel %vm413, %v412, %v411
        %v415 = vsel %vm346, %v414, 0
        %417 = vmatpush.msra.mxu0 0.0
        %418 = vmatpush.msra.mxu0 0.0
        %419 = vmatpush.msra.mxu0 0.0
        %420 = vmatpush.msra.mxu0 0.0
        %421 = vmatpush.msra.mxu0 0.0
        %422 = vmatpush.msra.mxu0 0.0
        %423 = vmatpush.msra.mxu0 0.0
        %424 = vmatpush.msra.mxu0 0.0
        %425 = vmatpush.msra.mxu0 0.0
        %426 = vmatpush.msra.mxu0 0.0
        %427 = vmatpush.msra.mxu0 0.0
        %428 = vmatpush.msra.mxu0 0.0
        %429 = vmatpush.msra.mxu0 0.0
        %430 = vmatpush.msra.mxu0 0.0
        %431 = vmatpush.msra.mxu0 0.0
        %432 = vmatpush.msra.mxu0 %v333
        %433 = vmatmul.f32.gmra.mxu0 %v415
        %v434 = vpop.f32.mrf.mxu0
        %v435 = vadd.f32 %v405, %v434
        %436 = vdwg.mxu0
        %vm437 = vcmask 25600
        %438 = vst.msk [vmem:[%s310] sm:$0x3] %vm437, %v435
        %s439 = sand.u32 %s193, 1
        %s440 = scalar_lea.sflag [#allocation4], %s439
        %s441 = sand.u32 %s193, 1
        %s442 = smul.addr %s441, 2
        %s443 = scalar_lea.vmem [#allocation3], %s442
        // Predicated region
        $region49: #{tpu_custom_call.1} parent=47 // pred_check
          %p444 = pneg %p203
        $region50: #{tpu_custom_call.1} parent=47 // pred_check_branch
          %446 = sbr.rel (%p444) target = $region52
        $region51: #{tpu_custom_call.1} parent=47 // pred_region
          %448 = vsyncadd %s440, 0
          %s449 = smul.addr %s23, 2
          %s450 = scalar_lea.hbm %s7, %s449
          %s452 = sshll.u32 %s443, 4
          %s453 = int_to_ptr.vmem [resolvable:$true] %s452
          %s454 = sshll.u32 %s450, 4
          %s455 = int_to_ptr.hbm [resolvable:$true] %s454
          %457 = dma.vmem_to_hbm [thread:$0]  %s453, 32, %s455, %s440
        $region52: #{tpu_custom_call.1} parent=47 // pred_fallthru
          _
      $region48: #{tpu_custom_call.1} parent=5 // pred_fallthru
        _
      %p458 = scmp.le.s32.totalorder 2, %s18
      // Predicated region
      $region53: #{tpu_custom_call.1} parent=5 // pred_check
        %p459 = pneg %p458
      $region54: #{tpu_custom_call.1} parent=5 // pred_check_branch
        %461 = sbr.rel (%p459) target = $region56
      $region55: #{tpu_custom_call.1} parent=5 // pred_region
        %s462 = ssub.s32 %s18, 2
        // Predicated region
        $region57: #{tpu_custom_call.1} parent=55 // pred_check
          %p463 = pneg %p209
        $region58: #{tpu_custom_call.1} parent=55 // pred_check_branch
          %465 = sbr.rel (%p463) target = $region60
        $region59: #{tpu_custom_call.1} parent=55 // pred_region
          %s466 = sand.u32 %s194, 1
          %s467 = scalar_lea.sflag [#allocation4], %s466
          %s468 = sand.u32 %s194, 1
          %s469 = smul.addr %s468, 2
          %s470 = scalar_lea.vmem [#allocation3], %s469
          %472 = dma.done %s467, 32
        $region60: #{tpu_custom_call.1} parent=55 // pred_fallthru
          _
      $region56: #{tpu_custom_call.1} parent=5 // pred_fallthru
        _
    $region6: #{tpu_custom_call.1} parent=1 // loop_footer
      %s22 = sadd.s32 1, %s18
    $region7: #{tpu_custom_call.1} parent=1 // loop_footer_branch
      %17 = sbr.rel target = $region3
    $region8: #{tpu_custom_call.1} parent=1 // loop_exit
      _
    %473 = vsyncpa [#allocation4], 1
    %s474 = scalar_lea.sflag [#allocation4], 1
    %475 = vsyncpa %s474, 1

</llo_original>
